<compile_context>
chip_gen: v6e
topology: v6e:2x2x1
jax: 0.10.0
libtpu: 0.0.40
codegen_flags: <defaults>
</compile_context>

<pallas_src>
import jax
import jax.numpy as jnp
from jax.experimental import pallas as pl
from jax.experimental.pallas import tpu as pltpu


def _round_up(x, m):
    return (x + m - 1) // m * m


def _conv_head_kernel(patches_ref, pool_ref, w1_ref, b1_ref, w2_ref, b2_ref,
                      out_ref, acc_ref):
    # patches: [1, TP, KKp] bf16   pool: [1, TP] f32 (1/P for valid rows, 0 for pad)
    # w1: [KKp, Hp] bf16           b1: [1, Hp] f32
    # w2: [Hp, Op] f32             b2: [1, Op] f32
    # out: [1, 1, Op] f32          acc scratch: [1, Hp] f32
    p = pl.program_id(1)

    @pl.when(p == 0)
    def _init():
        acc_ref[...] = jnp.zeros_like(acc_ref)

    # Conv2d(1 -> H) as a single flattened 2-D MXU matmul over im2col patches.
    s = jnp.dot(patches_ref[0], w1_ref[...], preferred_element_type=jnp.float32)
    s = jnp.maximum(s + b1_ref[...], 0.0)                    # bias + ReLU, [TP, Hp]
    # Masked global-average-pool partial sum as an MXU matmul (pool row already
    # carries the 1/P weights; padded rows weighted 0). Accumulated over P tiles.
    acc_ref[...] += jnp.dot(pool_ref[...], s, preferred_element_type=jnp.float32)

    @pl.when(p == pl.num_programs(1) - 1)
    def _finalize():
        logits = jnp.dot(acc_ref[...], w2_ref[...],
                         preferred_element_type=jnp.float32) + b2_ref[...]
        out_ref[0] = logits.astype(out_ref.dtype)


def simple_conv2d_forward(x, w_conv, b_conv, w_fc, b_fc, kernel_size, *,
                          tile_p=128):
    """Forward pass matching simple_Conv_2D.forward.

    x: [B, 1, H, W] or [B, H, W] float32
    w_conv: [n_hidden, 1, K, K], b_conv: [n_hidden]
    w_fc: [2, n_hidden], b_fc: [2]
    returns [B, 2] float32
    """
    if x.ndim == 3:                       # matches `x = x.unsqueeze(1)`
        x = x[:, None, :, :]
    B, C, H, W = x.shape
    assert C == 1
    K = kernel_size
    pad = K // 2
    assert tile_p % 128 == 0, "tile_p must be a multiple of 128 (lane dim of pool)"

    # ---- circular padding + im2col (plain-JAX layout glue) ----
    xp = jnp.pad(x, ((0, 0), (0, 0), (pad, pad), (pad, pad)), mode="wrap")
    H_out = H + 2 * pad - K + 1
    W_out = W + 2 * pad - K + 1
    P = H_out * W_out
    cols = []
    for ki in range(K):
        for kj in range(K):
            cols.append(xp[:, 0, ki:ki + H_out, kj:kj + W_out])
    patches = jnp.stack(cols, axis=-1).reshape(B, P, K * K)

    # ---- pad to lane/sublane-friendly, TPU-dense shapes ----
    n_hidden = w_conv.shape[0]
    KK = K * K
    KK_pad = _round_up(KK, 16)            # bf16 sublane pack for w1; full-block lane dim
    H_pad = _round_up(n_hidden, 128)      # lane-dense hidden dim
    OUT_pad = 128                         # lane-dense output (sliced to 2 in wrapper)
    P_pad = _round_up(P, tile_p)

    patches_p = jnp.pad(patches.astype(jnp.bfloat16),
                        ((0, 0), (0, P_pad - P), (0, KK_pad - KK)))

    w1 = w_conv.reshape(n_hidden, KK).T.astype(jnp.bfloat16)        # [KK, H]
    w1p = jnp.zeros((KK_pad, H_pad), jnp.bfloat16).at[:KK, :n_hidden].set(w1)
    b1p = jnp.zeros((1, H_pad), jnp.float32).at[0, :n_hidden].set(
        b_conv.astype(jnp.float32))
    w2p = jnp.zeros((H_pad, OUT_pad), jnp.float32).at[:n_hidden, :2].set(
        w_fc.T.astype(jnp.float32))
    b2p = jnp.zeros((1, OUT_pad), jnp.float32).at[0, :2].set(
        b_fc.astype(jnp.float32))
    # Pool row: 1/P for valid spatial positions, 0 for P-padding.
    pool = jnp.zeros((1, P_pad), jnp.float32).at[0, :P].set(1.0 / P)

    grid = (B, P_pad // tile_p)

    cost = pl.CostEstimate(
        flops=2 * B * P_pad * KK_pad * H_pad     # conv matmul
              + 2 * B * P_pad * H_pad            # pool matmul
              + 2 * B * H_pad * OUT_pad,         # classifier
        transcendentals=0,
        bytes_accessed=int(patches_p.size) * 2 + int(pool.size) * 4
                       + int(w1p.size) * 2 + int(b1p.size) * 4
                       + int(w2p.size) * 4 + int(b2p.size) * 4
                       + B * OUT_pad * 4,
    )

    out = pl.pallas_call(
        _conv_head_kernel,
        out_shape=jax.ShapeDtypeStruct((B, 1, OUT_pad), jnp.float32),
        grid_spec=pltpu.PrefetchScalarGridSpec(
            num_scalar_prefetch=0,
            grid=grid,
            in_specs=[
                pl.BlockSpec((1, tile_p, KK_pad), lambda b, p: (b, p, 0)),  # patches
                pl.BlockSpec((1, tile_p), lambda b, p: (0, p)),             # pool row
                pl.BlockSpec((KK_pad, H_pad), lambda b, p: (0, 0)),         # w1 (resident)
                pl.BlockSpec((1, H_pad), lambda b, p: (0, 0)),              # b1
                pl.BlockSpec((H_pad, OUT_pad), lambda b, p: (0, 0)),        # w2
                pl.BlockSpec((1, OUT_pad), lambda b, p: (0, 0)),            # b2
            ],
            out_specs=pl.BlockSpec((1, 1, OUT_pad), lambda b, p: (b, 0, 0)),
            scratch_shapes=[pltpu.VMEM((1, H_pad), jnp.float32)],
        ),
        compiler_params=pltpu.CompilerParams(
            dimension_semantics=("parallel", "arbitrary")),
        cost_estimate=cost,
    )(patches_p, pool, w1p, b1p, w2p, b2p)

    return out[:, 0, :2]


def _reference(x, w_conv, b_conv, w_fc, b_fc, K):
    """Pure-JAX reference mirroring the PyTorch module."""
    if x.ndim == 3:
        x = x[:, None, :, :]
    pad = K // 2
    xp = jnp.pad(x, ((0, 0), (0, 0), (pad, pad), (pad, pad)), mode="wrap")
    y = jax.lax.conv_general_dilated(
        xp, w_conv, window_strides=(1, 1), padding="VALID",
        dimension_numbers=("NCHW", "OIHW", "NCHW"))
    y = y + b_conv[None, :, None, None]
    y = jnp.maximum(y, 0.0)
    pooled = jnp.mean(y, axis=(2, 3))
    return pooled @ w_fc.T + b_fc[None, :]


if __name__ == "__main__":
    def _run(seed, B, H, W, n_hidden, K):
        key = jax.random.PRNGKey(seed)
        kx, kwc, kbc, kwf, kbf = jax.random.split(key, 5)
        x = jax.random.normal(kx, (B, 1, H, W), dtype=jnp.float32)
        w_conv = 0.1 * jax.random.normal(kwc, (n_hidden, 1, K, K), jnp.float32)
        b_conv = 0.1 * jax.random.normal(kbc, (n_hidden,), jnp.float32)
        w_fc = 0.1 * jax.random.normal(kwf, (2, n_hidden), jnp.float32)
        b_fc = 0.1 * jax.random.normal(kbf, (2,), jnp.float32)

        out = simple_conv2d_forward(x, w_conv, b_conv, w_fc, b_fc, K)
        out = jax.block_until_ready(out)
        ref = _reference(x, w_conv, b_conv, w_fc, b_fc, K)
        assert out.shape == (B, 2)
        assert jnp.allclose(out, ref, atol=5e-3, rtol=1e-2), (out, ref)

    # even kernel (module-style padding = K//2); exercises 3 P-tiles of accumulation
    _run(0, B=2, H=16, W=16, n_hidden=8, K=6)
    # odd kernel / different hidden width sanity check
    _run(1, B=3, H=12, W=12, n_hidden=16, K=5)
    print("KERNEL_OK")
</pallas_src>

<mosaic_0001>
module attributes {stable_mosaic.version = 11 : i64} {
  func.func @_conv_head_kernel(%arg0: i32, %arg1: i32, %arg2: memref<1x128x48xbf16, #tpu.memory_space<vmem>>, %arg3: memref<1x128xf32, #tpu.memory_space<vmem>>, %arg4: memref<48x128xbf16, #tpu.memory_space<vmem>>, %arg5: memref<1x128xf32, #tpu.memory_space<vmem>>, %arg6: memref<128x128xf32, #tpu.memory_space<vmem>>, %arg7: memref<1x128xf32, #tpu.memory_space<vmem>>, %arg8: memref<1x1x128xf32, #tpu.memory_space<vmem>>, %arg9: memref<1x128xf32, #tpu.memory_space<vmem>>) attributes {dimension_semantics = [#tpu.dimension_semantics<parallel>, #tpu.dimension_semantics<arbitrary>], iteration_bounds = array<i64: 2, 3>, scalar_prefetch = 0 : i64, scratch_operands = 1 : i64, tpu.core_type = #tpu.core_type<tc>, window_params = [{transform_indices = @transform_0, window_bounds = array<i64: 1, 128, 48>}, {transform_indices = @transform_1, window_bounds = array<i64: 1, 128>}, {pipeline_mode = #tpu.pipeline_mode<synchronous>, transform_indices = @transform_2, window_bounds = array<i64: 48, 128>}, {pipeline_mode = #tpu.pipeline_mode<synchronous>, transform_indices = @transform_3, window_bounds = array<i64: 1, 128>}, {pipeline_mode = #tpu.pipeline_mode<synchronous>, transform_indices = @transform_4, window_bounds = array<i64: 128, 128>}, {pipeline_mode = #tpu.pipeline_mode<synchronous>, transform_indices = @transform_5, window_bounds = array<i64: 1, 128>}, {transform_indices = @transform_6, window_bounds = array<i64: 1, 1, 128>}]} {
    %c0_i32 = arith.constant 0 : i32
    %0 = arith.cmpi eq, %arg1, %c0_i32 : i32
    %1 = arith.extui %0 : i1 to i32
    %c0_i32_0 = arith.constant 0 : i32
    %2 = arith.cmpi ne, %1, %c0_i32_0 : i32
    scf.if %2 {
      %cst_16 = arith.constant 0.000000e+00 : f32
      %20 = vector.broadcast %cst_16 : f32 to vector<1x128xf32>
      %c0_17 = arith.constant 0 : index
      %c0_18 = arith.constant 0 : index
      %21 = vector.load %arg9[%c0_17, %c0_18] : memref<1x128xf32, #tpu.memory_space<vmem>>, vector<1x128xf32>
      tpu.vector_store %arg9[%c0_17, %c0_18], %20 {strides = array<i32>} : memref<1x128xf32, #tpu.memory_space<vmem>>, vector<1x128xf32>,
    } else {
    }
    %c0 = arith.constant 0 : index
    %c0_1 = arith.constant 0 : index
    %c0_2 = arith.constant 0 : index
    %3 = vector.load %arg2[%c0, %c0_1, %c0_2] : memref<1x128x48xbf16, #tpu.memory_space<vmem>>, vector<1x128x48xbf16>
    %4 = vector.shape_cast %3 : vector<1x128x48xbf16> to vector<128x48xbf16>
    %c0_3 = arith.constant 0 : index
    %c0_4 = arith.constant 0 : index
    %5 = vector.load %arg4[%c0_3, %c0_4] : memref<48x128xbf16, #tpu.memory_space<vmem>>, vector<48x128xbf16>
    %cst = arith.constant dense<0.000000e+00> : vector<128x128xf32>
    %6 = tpu.matmul %4, %5, %cst {dimension_numbers = #tpu.dot_dimension_numbers<[1], [0], [0], [1], [0, 0, 1, 1], [], []>} : vector<128x48xbf16>, vector<48x128xbf16>, vector<128x128xf32> -> vector<128x128xf32>
    %c0_5 = arith.constant 0 : index
    %c0_6 = arith.constant 0 : index
    %7 = vector.load %arg5[%c0_5, %c0_6] : memref<1x128xf32, #tpu.memory_space<vmem>>, vector<1x128xf32>
    %8 = vector.broadcast %7 : vector<1x128xf32> to vector<128x128xf32>
    %9 = arith.addf %6, %8 : vector<128x128xf32>
    %cst_7 = arith.constant 0.000000e+00 : f32
    %10 = vector.broadcast %cst_7 : f32 to vector<128x128xf32>
    %11 = arith.maximumf %9, %10 : vector<128x128xf32>
    %c0_8 = arith.constant 0 : index
    %c0_9 = arith.constant 0 : index
    %12 = vector.load %arg9[%c0_8, %c0_9] : memref<1x128xf32, #tpu.memory_space<vmem>>, vector<1x128xf32>
    %c0_10 = arith.constant 0 : index
    %c0_11 = arith.constant 0 : index
    %13 = vector.load %arg3[%c0_10, %c0_11] : memref<1x128xf32, #tpu.memory_space<vmem>>, vector<1x128xf32>
    %cst_12 = arith.constant dense<0.000000e+00> : vector<1x128xf32>
    %14 = tpu.matmul %13, %11, %cst_12 {dimension_numbers = #tpu.dot_dimension_numbers<[1], [0], [0], [1], [0, 0, 1, 1], [], []>} : vector<1x128xf32>, vector<128x128xf32>, vector<1x128xf32> -> vector<1x128xf32>
    %15 = arith.addf %12, %14 : vector<1x128xf32>
    %c0_13 = arith.constant 0 : index
    %c0_14 = arith.constant 0 : index
    %16 = vector.load %arg9[%c0_13, %c0_14] : memref<1x128xf32, #tpu.memory_space<vmem>>, vector<1x128xf32>
    tpu.vector_store %arg9[%c0_13, %c0_14], %15 {strides = array<i32>} : memref<1x128xf32, #tpu.memory_space<vmem>>, vector<1x128xf32>,
    %c2_i32 = arith.constant 2 : i32
    %17 = arith.cmpi eq, %arg1, %c2_i32 : i32
    %18 = arith.extui %17 : i1 to i32
    %c0_i32_15 = arith.constant 0 : i32
    %19 = arith.cmpi ne, %18, %c0_i32_15 : i32
    scf.if %19 {
      %c0_16 = arith.constant 0 : index
      %c0_17 = arith.constant 0 : index
      %20 = vector.load %arg9[%c0_16, %c0_17] : memref<1x128xf32, #tpu.memory_space<vmem>>, vector<1x128xf32>
      %c0_18 = arith.constant 0 : index
      %c0_19 = arith.constant 0 : index
      %21 = vector.load %arg6[%c0_18, %c0_19] : memref<128x128xf32, #tpu.memory_space<vmem>>, vector<128x128xf32>
      %cst_20 = arith.constant dense<0.000000e+00> : vector<1x128xf32>
      %22 = tpu.matmul %20, %21, %cst_20 {dimension_numbers = #tpu.dot_dimension_numbers<[1], [0], [0], [1], [0, 0, 1, 1], [], []>} : vector<1x128xf32>, vector<128x128xf32>, vector<1x128xf32> -> vector<1x128xf32>
      %c0_21 = arith.constant 0 : index
      %c0_22 = arith.constant 0 : index
      %23 = vector.load %arg7[%c0_21, %c0_22] : memref<1x128xf32, #tpu.memory_space<vmem>>, vector<1x128xf32>
      %24 = arith.addf %22, %23 : vector<1x128xf32>
      %c0_23 = arith.constant 0 : index
      %c0_24 = arith.constant 0 : index
      %c0_25 = arith.constant 0 : index
      %25 = vector.load %arg8[%c0_23, %c0_24, %c0_25] : memref<1x1x128xf32, #tpu.memory_space<vmem>>, vector<1x1x128xf32>
      %26 = vector.shape_cast %25 : vector<1x1x128xf32> to vector<1x128xf32>
      %27 = vector.shape_cast %24 : vector<1x128xf32> to vector<1x1x128xf32>
      tpu.vector_store %arg8[%c0_23, %c0_24, %c0_25], %27 {strides = array<i32>} : memref<1x1x128xf32, #tpu.memory_space<vmem>>, vector<1x1x128xf32>,
    } else {
    }
    return
  }
  func.func @transform_0(%arg0: i32, %arg1: i32) -> (i32, i32, i32) {
    %c0_i32 = arith.constant 0 : i32
    %c0_i32_0 = arith.constant 0 : i32
    return %arg0, %arg1, %c0_i32 : i32, i32, i32
  }
  func.func @transform_1(%arg0: i32, %arg1: i32) -> (i32, i32) {
    %c0_i32 = arith.constant 0 : i32
    %c0_i32_0 = arith.constant 0 : i32
    return %c0_i32, %arg1 : i32, i32
  }
  func.func @transform_2(%arg0: i32, %arg1: i32) -> (i32, i32) {
    %c0_i32 = arith.constant 0 : i32
    %c0_i32_0 = arith.constant 0 : i32
    %c0_i32_1 = arith.constant 0 : i32
    return %c0_i32, %c0_i32_0 : i32, i32
  }
  func.func @transform_3(%arg0: i32, %arg1: i32) -> (i32, i32) {
    %c0_i32 = arith.constant 0 : i32
    %c0_i32_0 = arith.constant 0 : i32
    %c0_i32_1 = arith.constant 0 : i32
    return %c0_i32, %c0_i32_0 : i32, i32
  }
  func.func @transform_4(%arg0: i32, %arg1: i32) -> (i32, i32) {
    %c0_i32 = arith.constant 0 : i32
    %c0_i32_0 = arith.constant 0 : i32
    %c0_i32_1 = arith.constant 0 : i32
    return %c0_i32, %c0_i32_0 : i32, i32
  }
  func.func @transform_5(%arg0: i32, %arg1: i32) -> (i32, i32) {
    %c0_i32 = arith.constant 0 : i32
    %c0_i32_0 = arith.constant 0 : i32
    %c0_i32_1 = arith.constant 0 : i32
    return %c0_i32, %c0_i32_0 : i32, i32
  }
  func.func @transform_6(%arg0: i32, %arg1: i32) -> (i32, i32, i32) {
    %c0_i32 = arith.constant 0 : i32
    %c0_i32_0 = arith.constant 0 : i32
    %c0_i32_1 = arith.constant 0 : i32
    return %arg0, %c0_i32, %c0_i32_0 : i32, i32, i32
  }
}

</mosaic_0001>

<llo_original>
// kernel: tpu_custom_call.1
$region0: #{tpu_custom_call.1}
  #allocation0 [shape = 'u32[]', space=smem, size = 0x4, offset = 0x4, fixed_abs, tag = 'smem constant byte address 0x4 - core index']
  #allocation1 [shape = 'u32[144,128]{1,0:T(1,128)}', space=vmem, size = 0x12000, scoped, tag = 'internal scratch']
  #allocation2 [shape = 'f32[1,128]{1,0:T(1,128)}', space=vmem, size = 0x200, scoped, tag = 'scratch operand']
  %s0 = inlined_call_operand.vmem [shape: bf16[2,384,48], index: 0, kind: input, shape index: {}]
  %s1 = inlined_call_operand.vmem [shape: f32[1,384], index: 1, kind: input, shape index: {}]
  %s2 = inlined_call_operand.vmem [shape: bf16[48,128], index: 2, kind: input, shape index: {}]
  %s3 = inlined_call_operand.vmem [shape: f32[1,128], index: 3, kind: input, shape index: {}]
  %s4 = inlined_call_operand.vmem [shape: f32[128,128], index: 4, kind: input, shape index: {}]
  %s5 = inlined_call_operand.vmem [shape: f32[1,128], index: 5, kind: input, shape index: {}]
  %s6 = inlined_call_operand.hbm [shape: f32[2,1,128], index: 6, kind: output, shape index: {}]
  %s7 = sld [smem:[#allocation0]]
  $region65: #{tpu_custom_call.1} parent=0
    _
  %s9 = ssub.s32 1, %s7
  %s10 = scalar_select 0, %s9, %s7
  $region1: #{tpu_custom_call.1} parent=0
    #allocation3 [shape = 'u8[1024]{0}', space=vmem, size = 0x400, scoped, tag = 'output window, operand 0']
    #allocation4 [shape = 's32[2]{0}', space=sflag, size = 0x8, scoped, tag = 'scoped memory for tpu_custom_call.1']
    %11 = vsyncpa [#allocation4], 0
    %s12 = scalar_lea.sflag [#allocation4], 1
    %13 = vsyncpa %s12, 0
    loop: start=0, step=1, limit=8
    $region2: #{tpu_custom_call.1} parent=1 // loop_pre_header
      _
    $region3: #{tpu_custom_call.1} parent=1 // loop_header
      %s15 = sphi 0, %s19
      %p16 = scmp.ge.s32.totalorder %s15, 8
      %s22 = sphi 0, %s34
      %s23 = sphi 0, %s30
      %s24 = sphi 0, %s22
      %s25 = sphi 0, %s23
      %s26 = sphi 0, %s24
      %s27 = sphi 0, %s25
      %s39 = sphi 0, %s41
      %s42 = sphi 0, %s39
      %s43 = sphi 0, %s42
      %s59 = sphi 0, %s43
      %s65 = sphi 0, %s67
      %s68 = sphi 0, %s65
      %s69 = sphi 0, %s68
      %s85 = sphi 0, %s69
      %s89 = sphi 0, %s89
      %s91 = sphi 0, %s89
      %s92 = sphi 0, %s91
      %s106 = sphi 0, %s92
      %s110 = sphi 0, %s110
      %s112 = sphi 0, %s110
      %s113 = sphi 0, %s112
      %s127 = sphi 0, %s113
      %s131 = sphi 0, %s131
      %s133 = sphi 0, %s131
      %s134 = sphi 0, %s133
      %s148 = sphi 0, %s134
      %s152 = sphi 0, %s152
      %s154 = sphi 0, %s152
      %s155 = sphi 0, %s154
      %s169 = sphi 0, %s155
      %s175 = sphi 0, %s177
      %s178 = sphi 0, %s175
      %s179 = sphi 0, %s178
      %s195 = sphi 0, %s179
    $region4: #{tpu_custom_call.1} parent=1 // loop_header_branch
      %18 = sbr.rel (%p16) target = $region8
    $region5: #{tpu_custom_call.1} parent=1 // loop_body
      %s20 = ssub.s32 %s15, 1
      %s21 = ssub.s32 %s15, 2
      %s28 = sadd.s32 1, %s23
      %p29 = scmp.ge.s32.totalorder %s28, 3
      %s30 = scalar_select %p29, 0, %s28
      %s31 = sadd.s32 1, %s22
      %s32 = scalar_select %p29, %s31, %s22
      %p33 = scmp.ge.s32.totalorder %s32, 2
      %s34 = scalar_select %p33, 0, %s32
      %s35 = ssub.s32 %s22, %s34
      %s36 = ssub.s32 %s23, %s30
      %s37 = sor.u32 %s35, %s36
      %p38 = scmp.eq.s32.totalorder %s37, 0
      %s40 = sadd.s32 %s39, 1
      %s41 = scalar_select %p38, %s39, %s40
      %p44 = pneg %p38
      %p45 = scmp.eq.s32.totalorder %s15, 5
      %p46 = por %p44, %p45
      %p47 = scmp.ne.s32.totalorder %s39, %s42
      %p48 = scmp.eq.s32.totalorder %s15, 0
      %p49 = por %p47, %p48
      %p50 = scmp.ne.s32.totalorder %s39, %s42
      %p51 = scmp.eq.s32.totalorder %s20, 5
      %p52 = por %p50, %p51
      %p53 = scmp.ne.s32.totalorder %s42, %s43
      %p54 = scmp.eq.s32.totalorder %s20, 0
      %p55 = por %p53, %p54
      %p56 = scmp.ne.s32.totalorder %s42, %s43
      %p57 = scmp.eq.s32.totalorder %s21, 5
      %p58 = por %p56, %p57
      %p60 = scmp.ne.s32.totalorder %s43, %s59
      %p61 = scmp.eq.s32.totalorder %s21, 0
      %p62 = por %p60, %p61
      %s63 = ssub.s32 %s23, %s30
      %p64 = scmp.eq.s32.totalorder %s63, 0
      %s66 = sadd.s32 %s65, 1
      %s67 = scalar_select %p64, %s65, %s66
      %p70 = pneg %p64
      %p71 = scmp.eq.s32.totalorder %s15, 5
      %p72 = por %p70, %p71
      %p73 = scmp.ne.s32.totalorder %s65, %s68
      %p74 = scmp.eq.s32.totalorder %s15, 0
      %p75 = por %p73, %p74
      %p76 = scmp.ne.s32.totalorder %s65, %s68
      %p77 = scmp.eq.s32.totalorder %s20, 5
      %p78 = por %p76, %p77
      %p79 = scmp.ne.s32.totalorder %s68, %s69
      %p80 = scmp.eq.s32.totalorder %s20, 0
      %p81 = por %p79, %p80
      %p82 = scmp.ne.s32.totalorder %s68, %s69
      %p83 = scmp.eq.s32.totalorder %s21, 5
      %p84 = por %p82, %p83
      %p86 = scmp.ne.s32.totalorder %s69, %s85
      %p87 = scmp.eq.s32.totalorder %s21, 0
      %p88 = por %p86, %p87
      %s90 = sadd.s32 %s89, 1
      %p93 = scmp.eq.s32.totalorder %s15, 5
      %p94 = scmp.ne.s32.totalorder %s89, %s91
      %p95 = scmp.eq.s32.totalorder %s15, 0
      %p96 = por %p94, %p95
      %p97 = scmp.ne.s32.totalorder %s89, %s91
      %p98 = scmp.eq.s32.totalorder %s20, 5
      %p99 = por %p97, %p98
      %p100 = scmp.ne.s32.totalorder %s91, %s92
      %p101 = scmp.eq.s32.totalorder %s20, 0
      %p102 = por %p100, %p101
      %p103 = scmp.ne.s32.totalorder %s91, %s92
      %p104 = scmp.eq.s32.totalorder %s21, 5
      %p105 = por %p103, %p104
      %p107 = scmp.ne.s32.totalorder %s92, %s106
      %p108 = scmp.eq.s32.totalorder %s21, 0
      %p109 = por %p107, %p108
      %s111 = sadd.s32 %s110, 1
      %p114 = scmp.eq.s32.totalorder %s15, 5
      %p115 = scmp.ne.s32.totalorder %s110, %s112
      %p116 = scmp.eq.s32.totalorder %s15, 0
      %p117 = por %p115, %p116
      %p118 = scmp.ne.s32.totalorder %s110, %s112
      %p119 = scmp.eq.s32.totalorder %s20, 5
      %p120 = por %p118, %p119
      %p121 = scmp.ne.s32.totalorder %s112, %s113
      %p122 = scmp.eq.s32.totalorder %s20, 0
      %p123 = por %p121, %p122
      %p124 = scmp.ne.s32.totalorder %s112, %s113
      %p125 = scmp.eq.s32.totalorder %s21, 5
      %p126 = por %p124, %p125
      %p128 = scmp.ne.s32.totalorder %s113, %s127
      %p129 = scmp.eq.s32.totalorder %s21, 0
      %p130 = por %p128, %p129
      %s132 = sadd.s32 %s131, 1
      %p135 = scmp.eq.s32.totalorder %s15, 5
      %p136 = scmp.ne.s32.totalorder %s131, %s133
      %p137 = scmp.eq.s32.totalorder %s15, 0
      %p138 = por %p136, %p137
      %p139 = scmp.ne.s32.totalorder %s131, %s133
      %p140 = scmp.eq.s32.totalorder %s20, 5
      %p141 = por %p139, %p140
      %p142 = scmp.ne.s32.totalorder %s133, %s134
      %p143 = scmp.eq.s32.totalorder %s20, 0
      %p144 = por %p142, %p143
      %p145 = scmp.ne.s32.totalorder %s133, %s134
      %p146 = scmp.eq.s32.totalorder %s21, 5
      %p147 = por %p145, %p146
      %p149 = scmp.ne.s32.totalorder %s134, %s148
      %p150 = scmp.eq.s32.totalorder %s21, 0
      %p151 = por %p149, %p150
      %s153 = sadd.s32 %s152, 1
      %p156 = scmp.eq.s32.totalorder %s15, 5
      %p157 = scmp.ne.s32.totalorder %s152, %s154
      %p158 = scmp.eq.s32.totalorder %s15, 0
      %p159 = por %p157, %p158
      %p160 = scmp.ne.s32.totalorder %s152, %s154
      %p161 = scmp.eq.s32.totalorder %s20, 5
      %p162 = por %p160, %p161
      %p163 = scmp.ne.s32.totalorder %s154, %s155
      %p164 = scmp.eq.s32.totalorder %s20, 0
      %p165 = por %p163, %p164
      %p166 = scmp.ne.s32.totalorder %s154, %s155
      %p167 = scmp.eq.s32.totalorder %s21, 5
      %p168 = por %p166, %p167
      %p170 = scmp.ne.s32.totalorder %s155, %s169
      %p171 = scmp.eq.s32.totalorder %s21, 0
      %p172 = por %p170, %p171
      %s173 = ssub.s32 %s22, %s34
      %p174 = scmp.eq.s32.totalorder %s173, 0
      %s176 = sadd.s32 %s175, 1
      %s177 = scalar_select %p174, %s175, %s176
      %p180 = pneg %p174
      %p181 = scmp.eq.s32.totalorder %s15, 5
      %p182 = por %p180, %p181
      %p183 = scmp.ne.s32.totalorder %s175, %s178
      %p184 = scmp.eq.s32.totalorder %s15, 0
      %p185 = por %p183, %p184
      %p186 = scmp.ne.s32.totalorder %s175, %s178
      %p187 = scmp.eq.s32.totalorder %s20, 5
      %p188 = por %p186, %p187
      %p189 = scmp.ne.s32.totalorder %s178, %s179
      %p190 = scmp.eq.s32.totalorder %s20, 0
      %p191 = por %p189, %p190
      %p192 = scmp.ne.s32.totalorder %s178, %s179
      %p193 = scmp.eq.s32.totalorder %s21, 5
      %p194 = por %p192, %p193
      %p196 = scmp.ne.s32.totalorder %s179, %s195
      %p197 = scmp.eq.s32.totalorder %s21, 0
      %p198 = por %p196, %p197
      %p199 = scmp.le.s32.totalorder 1, %s15
      %p200 = scmp.lt.s32.totalorder %s15, 7
      %p201 = pnand %p199, %p200
      %p202 = pneg %p201
      // Predicated region
      $region9: #{tpu_custom_call.1} parent=5 // pred_check
        _
      $region10: #{tpu_custom_call.1} parent=5 // pred_check_branch
        %204 = sbr.rel (%p201) target = $region12
      $region11: #{tpu_custom_call.1} parent=5 // pred_region
        %s205 = ssub.s32 %s15, 1
        // Predicated region
        $region13: #{tpu_custom_call.1} parent=11 // pred_check
          %p206 = pneg %p102
        $region14: #{tpu_custom_call.1} parent=11 // pred_check_branch
          %208 = sbr.rel (%p206) target = $region16
        $region15: #{tpu_custom_call.1} parent=11 // pred_region
          _
        $region16: #{tpu_custom_call.1} parent=11 // pred_fallthru
          _
        // Predicated region
        $region17: #{tpu_custom_call.1} parent=11 // pred_check
          %p209 = pneg %p123
        $region18: #{tpu_custom_call.1} parent=11 // pred_check_branch
          %211 = sbr.rel (%p209) target = $region20
        $region19: #{tpu_custom_call.1} parent=11 // pred_region
          _
        $region20: #{tpu_custom_call.1} parent=11 // pred_fallthru
          _
        // Predicated region
        $region21: #{tpu_custom_call.1} parent=11 // pred_check
          %p212 = pneg %p144
        $region22: #{tpu_custom_call.1} parent=11 // pred_check_branch
          %214 = sbr.rel (%p212) target = $region24
        $region23: #{tpu_custom_call.1} parent=11 // pred_region
          _
        $region24: #{tpu_custom_call.1} parent=11 // pred_fallthru
          _
        // Predicated region
        $region25: #{tpu_custom_call.1} parent=11 // pred_check
          %p215 = pneg %p165
        $region26: #{tpu_custom_call.1} parent=11 // pred_check_branch
          %217 = sbr.rel (%p215) target = $region28
        $region27: #{tpu_custom_call.1} parent=11 // pred_region
          _
        $region28: #{tpu_custom_call.1} parent=11 // pred_fallthru
          _
      $region12: #{tpu_custom_call.1} parent=5 // pred_fallthru
        _
      %p218 = scmp.lt.s32.totalorder %s15, 6
      // Predicated region
      $region29: #{tpu_custom_call.1} parent=5 // pred_check
        %p219 = pneg %p218
      $region30: #{tpu_custom_call.1} parent=5 // pred_check_branch
        %221 = sbr.rel (%p219) target = $region32
      $region31: #{tpu_custom_call.1} parent=5 // pred_region
        // Predicated region
        $region33: #{tpu_custom_call.1} parent=31 // pred_check
          %p222 = pneg %p49
        $region34: #{tpu_custom_call.1} parent=31 // pred_check_branch
          %224 = sbr.rel (%p222) target = $region36
        $region35: #{tpu_custom_call.1} parent=31 // pred_region
          %s225 = smul.u32 16, %s23
          %p226 = scmp.lt.s32.totalorder %s22, 1
          %s227 = scalar_select %p226, %s22, 1
          %p228 = scmp.lt.s32.totalorder %s225, 47
          %s229 = scalar_select %p228, %s225, 47
          %s230 = smul.addr %s227, 48
          %s231 = sadd.s32 %s229, %s230
          %s232 = smul.addr %s231, 4
          %s233 = scalar_lea.vmem %s0, %s232
          %s234 = smul.u32 16, %s23
        $region36: #{tpu_custom_call.1} parent=31 // pred_fallthru
          _
        // Predicated region
        $region37: #{tpu_custom_call.1} parent=31 // pred_check
          %p235 = pneg %p75
        $region38: #{tpu_custom_call.1} parent=31 // pred_check_branch
          %237 = sbr.rel (%p235) target = $region40
        $region39: #{tpu_custom_call.1} parent=31 // pred_region
          %p238 = scmp.lt.s32.totalorder %s23, 2
          %s239 = scalar_select %p238, %s23, 2
          %s240 = scalar_lea.vmem %s1, %s239
        $region40: #{tpu_custom_call.1} parent=31 // pred_fallthru
          _
      $region32: #{tpu_custom_call.1} parent=5 // pred_fallthru
        _
      %p241 = scmp.le.s32.totalorder 1, %s15
      %p242 = scmp.lt.s32.totalorder %s15, 7
      %p243 = pnand %p241, %p242
      %p244 = pneg %p243
      // Predicated region
      $region41: #{tpu_custom_call.1} parent=5 // pred_check
        _
      $region42: #{tpu_custom_call.1} parent=5 // pred_check_branch
        %246 = sbr.rel (%p243) target = $region44
      $region43: #{tpu_custom_call.1} parent=5 // pred_region
        %s247 = ssub.s32 %s15, 1
        %s248 = smul.u32 16, %s25
        %p249 = scmp.lt.s32.totalorder %s24, 1
        %s250 = scalar_select %p249, %s24, 1
        %p251 = scmp.lt.s32.totalorder %s248, 47
        %s252 = scalar_select %p251, %s248, 47
        %s253 = smul.addr %s250, 48
        %s254 = sadd.s32 %s252, %s253
        %s255 = smul.addr %s254, 4
        %s256 = scalar_lea.vmem %s0, %s255
        %p257 = pneg %p55
        %p258 = pneg %p52
        %p259 = scmp.lt.s32.totalorder %s25, 2
        %s260 = scalar_select %p259, %s25, 2
        %s261 = scalar_lea.vmem %s1, %s260
        %p262 = pneg %p81
        %p263 = pneg %p78
        %p264 = pneg %p102
        %p265 = pneg %p99
        %p266 = pneg %p123
        %p267 = pneg %p120
        %p268 = pneg %p144
        %p269 = pneg %p141
        %p270 = pneg %p165
        %p271 = pneg %p162
        %p272 = pneg %p191
        %p273 = pneg %p188
        %s274 = sand.u32 %s178, 1
        %s275 = scalar_lea.sflag [#allocation4], %s274
        %s276 = sand.u32 %s178, 1
        %s277 = scalar_lea.vmem [#allocation3], %s276
        %s278 = smul.u32 16, %s25
        %p279 = scmp.lt.s32.totalorder %s24, 1
        %s280 = scalar_select %p279, %s24, 1
        %p281 = scmp.lt.s32.totalorder %s278, 47
        %s282 = scalar_select %p281, %s278, 47
        %s283 = smul.addr %s280, 48
        %s284 = sadd.s32 %s282, %s283
        %s285 = smul.addr %s284, 4
        %s286 = scalar_lea.vmem %s0, %s285
        %s287 = smul.u32 16, %s25
        %p288 = scmp.lt.s32.totalorder %s25, 2
        %s289 = scalar_select %p288, %s25, 2
        %s290 = scalar_lea.vmem %s1, %s289
        %p292 = scmp.eq.s32.totalorder %s25, 0
        // Predicated region
        $region45: #{tpu_custom_call.1} parent=43 // pred_check
          %p293 = pneg %p292
        $region46: #{tpu_custom_call.1} parent=43 // pred_check_branch
          %295 = sbr.rel (%p293) target = $region48
        $region47: #{tpu_custom_call.1} parent=43 // pred_region
          %296 = vst [vmem:[#allocation2] sm:$0x1] 0.0
        $region48: #{tpu_custom_call.1} parent=43 // pred_fallthru
          _
        %v297 = vld [vmem:[%s286] sm:$0xf]
        %v298 = vld [vmem:[%s286 + $0x4] sm:$0xf]
        %v299 = vld [vmem:[%s286 + $0x8] sm:$0xf]
        %v300 = vld [vmem:[%s286 + $0xc] sm:$0xf]
        %v301 = vld [vmem:[%s286 + $0x10] sm:$0xf]
        %v302 = vld [vmem:[%s286 + $0x14] sm:$0xf]
        %v303 = vld [vmem:[%s286 + $0x18] sm:$0xf]
        %v304 = vld [vmem:[%s286 + $0x1c] sm:$0xf]
        %v305 = vld [vmem:[%s286 + $0x20] sm:$0xf]
        %v306 = vld [vmem:[%s286 + $0x24] sm:$0xf]
        %v307 = vld [vmem:[%s286 + $0x28] sm:$0xf]
        %v308 = vld [vmem:[%s286 + $0x2c] sm:$0xf]
        %v309 = vld [vmem:[%s286 + $0x30] sm:$0xf]
        %v310 = vld [vmem:[%s286 + $0x34] sm:$0xf]
        %v311 = vld [vmem:[%s286 + $0x38] sm:$0xf]
        %v312 = vld [vmem:[%s286 + $0x3c] sm:$0xf]
        %v313 = vld [vmem:[%s2] sm:$0xf]
        %v314 = vld [vmem:[%s2 + $0x4] sm:$0xf]
        %v315 = vld [vmem:[%s2 + $0x8] sm:$0xf]
        %v316 = vld [vmem:[%s2 + $0xc] sm:$0xf]
        %v317 = vld [vmem:[%s2 + $0x10] sm:$0xf]
        %v318 = vld [vmem:[%s2 + $0x14] sm:$0xf]
        %v319 = vld [vmem:[%s3] sm:$0x1]
        %v321 = vlaneseq
        %v322 = vshrl.u32 %v321, 7
        %v323 = vsub.s32 0, %v322
        %v324 = vrot.slane %v319, %v323
        %v342 = vunpack.c.l.b16 %v297
        %v343 = vunpack.c.l.b16 %v298
        %v344 = vunpack.c.l.b16 %v299
        %v345 = vunpack.c.l.b16 %v300
        %v346 = vunpack.c.l.b16 %v301
        %v347 = vunpack.c.l.b16 %v302
        %v348 = vunpack.c.l.b16 %v303
        %v349 = vunpack.c.l.b16 %v304
        %v350 = vunpack.c.l.b16 %v305
        %v351 = vunpack.c.l.b16 %v306
        %v352 = vunpack.c.l.b16 %v307
        %v353 = vunpack.c.l.b16 %v308
        %v354 = vunpack.c.l.b16 %v309
        %v355 = vunpack.c.l.b16 %v310
        %v356 = vunpack.c.l.b16 %v311
        %v357 = vunpack.c.l.b16 %v312
        %v358 = vpack.c.b16 %v343, %v342
        %v359 = vpack.c.b16 %v345, %v344
        %v360 = vpack.c.b16 %v347, %v346
        %v361 = vpack.c.b16 %v349, %v348
        %v362 = vpack.c.b16 %v351, %v350
        %v363 = vpack.c.b16 %v353, %v352
        %v364 = vpack.c.b16 %v355, %v354
        %v365 = vpack.c.b16 %v357, %v356
        %v372 = vunpack.c.l.b16 %v313
        %v373 = vunpack.c.l.b16 %v314
        %v374 = vunpack.c.l.b16 %v315
        %v375 = vunpack.c.l.b16 %v316
        %v376 = vunpack.c.l.b16 %v317
        %v377 = vunpack.c.l.b16 %v318
        %v378 = vpack.c.b16 %v373, %v372
        %v379 = vpack.c.b16 %v375, %v374
        %v380 = vpack.c.b16 %v377, %v376
        %vm384 = vcmask 392192
        %v386 = vsel %vm384, %v358, 0
        %v389 = vsel %vm384, %v359, 0
        %v392 = vsel %vm384, %v360, 0
        %v395 = vsel %vm384, %v361, 0
        %v398 = vsel %vm384, %v362, 0
        %v401 = vsel %vm384, %v363, 0
        %v404 = vsel %vm384, %v364, 0
        %v407 = vsel %vm384, %v365, 0
        %409 = vmatprep.subr.bf16.mxu0 0
        %410 = vmatpush1.bf16.msra.mxu0 0
        %411 = vmatprep.subr.bf16.mxu0 0
        %412 = vmatpush1.bf16.msra.mxu0 0
        %413 = vmatprep.subr.bf16.mxu0 0
        %414 = vmatpush1.bf16.msra.mxu0 0
        %415 = vmatprep.subr.bf16.mxu0 0
        %416 = vmatpush1.bf16.msra.mxu0 0
        %417 = vmatprep.subr.bf16.mxu0 0
        %418 = vmatpush1.bf16.msra.mxu0 0
        %419 = vmatprep.subr.bf16.mxu0 0
        %420 = vmatpush1.bf16.msra.mxu0 %v380
        %421 = vmatprep.subr.bf16.mxu0 0
        %422 = vmatpush1.bf16.msra.mxu0 %v379
        %423 = vmatprep.subr.bf16.mxu0 0
        %424 = vmatpush1.bf16.msra.mxu0 %v378
        %425 = vmatprep.subr.bf16.mxu0 0
        %426 = vmatpush2.bf16.msra.mxu0 0
        %427 = vmatprep.subr.bf16.mxu0 0
        %428 = vmatpush2.bf16.msra.mxu0 0
        %429 = vmatprep.subr.bf16.mxu0 0
        %430 = vmatpush2.bf16.msra.mxu0 0
        %431 = vmatprep.subr.bf16.mxu0 0
        %432 = vmatpush2.bf16.msra.mxu0 0
        %433 = vmatprep.subr.bf16.mxu0 0
        %434 = vmatpush2.bf16.msra.mxu0 0
        %435 = vmatprep.subr.bf16.mxu0 0
        %436 = vmatpush2.bf16.msra.mxu0 0
        %437 = vmatprep.subr.bf16.mxu0 0
        %438 = vmatpush2.bf16.msra.mxu0 0
        %439 = vmatprep.subr.bf16.mxu0 0
        %440 = vmatpush2.bf16.msra.mxu0 0
        %441 = vmatprep.mubr.bf16.mxu0 0
        %442 = vmatmul.mubr.bf16.gmra.mxu0 %v386
        %v443 = vpop.f32.mrf.mxu0
        %v444 = vadd.f32 %v324, %v443
        %v445 = vpop.f32.mrf.mxu0
        %v446 = vpop.f32.mrf.mxu0
        %v447 = vadd.f32 %v324, %v446
        %v448 = vpop.f32.mrf.mxu0
        %449 = vmatprep.mubr.bf16.mxu0 0
        %450 = vmatmul.mubr.bf16.gmra.mxu0 %v389
        %v451 = vpop.f32.mrf.mxu0
        %v452 = vadd.f32 %v324, %v451
        %v453 = vpop.f32.mrf.mxu0
        %v454 = vpop.f32.mrf.mxu0
        %v455 = vadd.f32 %v324, %v454
        %v456 = vpop.f32.mrf.mxu0
        %457 = vmatprep.mubr.bf16.mxu0 0
        %458 = vmatmul.mubr.bf16.gmra.mxu0 %v392
        %v459 = vpop.f32.mrf.mxu0
        %v460 = vadd.f32 %v324, %v459
        %v461 = vpop.f32.mrf.mxu0
        %v462 = vpop.f32.mrf.mxu0
        %v463 = vadd.f32 %v324, %v462
        %v464 = vpop.f32.mrf.mxu0
        %465 = vmatprep.mubr.bf16.mxu0 0
        %466 = vmatmul.mubr.bf16.gmra.mxu0 %v395
        %v467 = vpop.f32.mrf.mxu0
        %v468 = vadd.f32 %v324, %v467
        %v469 = vpop.f32.mrf.mxu0
        %v470 = vpop.f32.mrf.mxu0
        %v471 = vadd.f32 %v324, %v470
        %v472 = vpop.f32.mrf.mxu0
        %473 = vmatprep.mubr.bf16.mxu0 0
        %474 = vmatmul.mubr.bf16.gmra.mxu0 %v398
        %v475 = vpop.f32.mrf.mxu0
        %v476 = vadd.f32 %v324, %v475
        %v477 = vpop.f32.mrf.mxu0
        %v478 = vpop.f32.mrf.mxu0
        %v479 = vadd.f32 %v324, %v478
        %v480 = vpop.f32.mrf.mxu0
        %481 = vmatprep.mubr.bf16.mxu0 0
        %482 = vmatmul.mubr.bf16.gmra.mxu0 %v401
        %v483 = vpop.f32.mrf.mxu0
        %v484 = vadd.f32 %v324, %v483
        %v485 = vpop.f32.mrf.mxu0
        %v486 = vpop.f32.mrf.mxu0
        %v487 = vadd.f32 %v324, %v486
        %v488 = vpop.f32.mrf.mxu0
        %489 = vmatprep.mubr.bf16.mxu0 0
        %490 = vmatmul.mubr.bf16.gmra.mxu0 %v404
        %v491 = vpop.f32.mrf.mxu0
        %v492 = vadd.f32 %v324, %v491
        %v493 = vpop.f32.mrf.mxu0
        %v494 = vpop.f32.mrf.mxu0
        %v495 = vadd.f32 %v324, %v494
        %v496 = vpop.f32.mrf.mxu0
        %497 = vmatprep.mubr.bf16.mxu0 0
        %498 = vmatmul.mubr.bf16.gmra.mxu0 %v407
        %v499 = vpop.f32.mrf.mxu0
        %v500 = vadd.f32 %v324, %v499
        %v501 = vpop.f32.mrf.mxu0
        %v502 = vpop.f32.mrf.mxu0
        %v503 = vadd.f32 %v324, %v502
        %v504 = vpop.f32.mrf.mxu0
        %505 = vdwg.mxu0
        %v506 = vmax.f32 %v444, 0.0
        %v507 = vmax.f32 %v447, 0.0
        %v508 = vmax.f32 %v452, 0.0
        %v509 = vmax.f32 %v455, 0.0
        %v510 = vmax.f32 %v460, 0.0
        %v511 = vmax.f32 %v463, 0.0
        %v512 = vmax.f32 %v468, 0.0
        %v513 = vmax.f32 %v471, 0.0
        %v514 = vmax.f32 %v476, 0.0
        %v515 = vmax.f32 %v479, 0.0
        %v516 = vmax.f32 %v484, 0.0
        %v517 = vmax.f32 %v487, 0.0
        %v518 = vmax.f32 %v492, 0.0
        %v519 = vmax.f32 %v495, 0.0
        %v520 = vmax.f32 %v500, 0.0
        %v521 = vmax.f32 %v503, 0.0
        %v522 = vld [vmem:[#allocation2] sm:$0x1]
        %v523 = vld [vmem:[%s290] sm:$0x1]
        %524 = vmatprep.subr.mxu0 0.0
        %525 = vmatpush1.msra.mxu0 %v521
        %526 = vmatprep.subr.mxu0 0.0
        %527 = vmatpush1.msra.mxu0 %v520
        %528 = vmatprep.subr.mxu0 0.0
        %529 = vmatpush1.msra.mxu0 %v519
        %530 = vmatprep.subr.mxu0 0.0
        %531 = vmatpush1.msra.mxu0 %v518
        %532 = vmatprep.subr.mxu0 0.0
        %533 = vmatpush1.msra.mxu0 %v517
        %534 = vmatprep.subr.mxu0 0.0
        %535 = vmatpush1.msra.mxu0 %v516
        %536 = vmatprep.subr.mxu0 0.0
        %537 = vmatpush1.msra.mxu0 %v515
        %538 = vmatprep.subr.mxu0 0.0
        %539 = vmatpush1.msra.mxu0 %v514
        %540 = vmatprep.subr.mxu0 0.0
        %541 = vmatpush1.msra.mxu0 %v513
        %542 = vmatprep.subr.mxu0 0.0
        %543 = vmatpush1.msra.mxu0 %v512
        %544 = vmatprep.subr.mxu0 0.0
        %545 = vmatpush1.msra.mxu0 %v511
        %546 = vmatprep.subr.mxu0 0.0
        %547 = vmatpush1.msra.mxu0 %v510
        %548 = vmatprep.subr.mxu0 0.0
        %549 = vmatpush1.msra.mxu0 %v509
        %550 = vmatprep.subr.mxu0 0.0
        %551 = vmatpush1.msra.mxu0 %v508
        %552 = vmatprep.subr.mxu0 0.0
        %553 = vmatpush1.msra.mxu0 %v507
        %554 = vmatprep.subr.mxu0 0.0
        %555 = vmatpush1.msra.mxu0 %v506
        %556 = vmatprep.subr.mxu0 0.0
        %557 = vmatpush2.msra.mxu0 0.0
        %558 = vmatprep.subr.mxu0 0.0
        %559 = vmatpush2.msra.mxu0 0.0
        %560 = vmatprep.subr.mxu0 0.0
        %561 = vmatpush2.msra.mxu0 0.0
        %562 = vmatprep.subr.mxu0 0.0
        %563 = vmatpush2.msra.mxu0 0.0
        %564 = vmatprep.subr.mxu0 0.0
        %565 = vmatpush2.msra.mxu0 0.0
        %566 = vmatprep.subr.mxu0 0.0
        %567 = vmatpush2.msra.mxu0 0.0
        %568 = vmatprep.subr.mxu0 0.0
        %569 = vmatpush2.msra.mxu0 0.0
        %570 = vmatprep.subr.mxu0 0.0
        %571 = vmatpush2.msra.mxu0 0.0
        %572 = vmatprep.subr.mxu0 0.0
        %573 = vmatpush2.msra.mxu0 0.0
        %574 = vmatprep.subr.mxu0 0.0
        %575 = vmatpush2.msra.mxu0 0.0
        %576 = vmatprep.subr.mxu0 0.0
        %577 = vmatpush2.msra.mxu0 0.0
        %578 = vmatprep.subr.mxu0 0.0
        %579 = vmatpush2.msra.mxu0 0.0
        %580 = vmatprep.subr.mxu0 0.0
        %581 = vmatpush2.msra.mxu0 0.0
        %582 = vmatprep.subr.mxu0 0.0
        %583 = vmatpush2.msra.mxu0 0.0
        %584 = vmatprep.subr.mxu0 0.0
        %585 = vmatpush2.msra.mxu0 0.0
        %586 = vmatprep.subr.mxu0 0.0
        %587 = vmatpush2.msra.mxu0 0.0
        %588 = vmatprep.mubr.f32.mxu0 0.0
        %589 = vmatmul.mubr.f32.gmra.mxu0 %v523
        %v590 = vpop.f32.mrf.mxu0
        %v591 = vadd.f32 0.0, %v590
        %v592 = vpop.f32.mrf.mxu0
        %593 = vdwg.mxu0
        %v594 = vadd.f32 %v522, %v591
        %595 = vst [vmem:[#allocation2] sm:$0x1] %v594
        %p596 = scmp.eq.s32.totalorder %s25, 2
        // Predicated region
        $region49: #{tpu_custom_call.1} parent=43 // pred_check
          %p597 = pneg %p596
        $region50: #{tpu_custom_call.1} parent=43 // pred_check_branch
          %599 = sbr.rel (%p597) target = $region52
        $region51: #{tpu_custom_call.1} parent=43 // pred_region
          %v600 = vld [vmem:[#allocation2] sm:$0x1]
          %v601 = vld [vmem:[%s4] sm:$0xff]
          %v602 = vld [vmem:[%s4 + $0x8] sm:$0xff]
          %v603 = vld [vmem:[%s4 + $0x10] sm:$0xff]
          %v604 = vld [vmem:[%s4 + $0x18] sm:$0xff]
          %v605 = vld [vmem:[%s4 + $0x20] sm:$0xff]
          %v606 = vld [vmem:[%s4 + $0x28] sm:$0xff]
          %v607 = vld [vmem:[%s4 + $0x30] sm:$0xff]
          %v608 = vld [vmem:[%s4 + $0x38] sm:$0xff]
          %v609 = vld [vmem:[%s4 + $0x40] sm:$0xff]
          %v610 = vld [vmem:[%s4 + $0x48] sm:$0xff]
          %v611 = vld [vmem:[%s4 + $0x50] sm:$0xff]
          %v612 = vld [vmem:[%s4 + $0x58] sm:$0xff]
          %v613 = vld [vmem:[%s4 + $0x60] sm:$0xff]
          %v614 = vld [vmem:[%s4 + $0x68] sm:$0xff]
          %v615 = vld [vmem:[%s4 + $0x70] sm:$0xff]
          %v616 = vld [vmem:[%s4 + $0x78] sm:$0xff]
          %v617 = vld [vmem:[%s5] sm:$0x1]
          %618 = vmatprep.subr.mxu0 0.0
          %619 = vmatpush1.msra.mxu0 %v616
          %620 = vmatprep.subr.mxu0 0.0
          %621 = vmatpush1.msra.mxu0 %v615
          %622 = vmatprep.subr.mxu0 0.0
          %623 = vmatpush1.msra.mxu0 %v614
          %624 = vmatprep.subr.mxu0 0.0
          %625 = vmatpush1.msra.mxu0 %v613
          %626 = vmatprep.subr.mxu0 0.0
          %627 = vmatpush1.msra.mxu0 %v612
          %628 = vmatprep.subr.mxu0 0.0
          %629 = vmatpush1.msra.mxu0 %v611
          %630 = vmatprep.subr.mxu0 0.0
          %631 = vmatpush1.msra.mxu0 %v610
          %632 = vmatprep.subr.mxu0 0.0
          %633 = vmatpush1.msra.mxu0 %v609
          %634 = vmatprep.subr.mxu0 0.0
          %635 = vmatpush1.msra.mxu0 %v608
          %636 = vmatprep.subr.mxu0 0.0
          %637 = vmatpush1.msra.mxu0 %v607
          %638 = vmatprep.subr.mxu0 0.0
          %639 = vmatpush1.msra.mxu0 %v606
          %640 = vmatprep.subr.mxu0 0.0
          %641 = vmatpush1.msra.mxu0 %v605
          %642 = vmatprep.subr.mxu0 0.0
          %643 = vmatpush1.msra.mxu0 %v604
          %644 = vmatprep.subr.mxu0 0.0
          %645 = vmatpush1.msra.mxu0 %v603
          %646 = vmatprep.subr.mxu0 0.0
          %647 = vmatpush1.msra.mxu0 %v602
          %648 = vmatprep.subr.mxu0 0.0
          %649 = vmatpush1.msra.mxu0 %v601
          %650 = vmatprep.subr.mxu0 0.0
          %651 = vmatpush2.msra.mxu0 0.0
          %652 = vmatprep.subr.mxu0 0.0
          %653 = vmatpush2.msra.mxu0 0.0
          %654 = vmatprep.subr.mxu0 0.0
          %655 = vmatpush2.msra.mxu0 0.0
          %656 = vmatprep.subr.mxu0 0.0
          %657 = vmatpush2.msra.mxu0 0.0
          %658 = vmatprep.subr.mxu0 0.0
          %659 = vmatpush2.msra.mxu0 0.0
          %660 = vmatprep.subr.mxu0 0.0
          %661 = vmatpush2.msra.mxu0 0.0
          %662 = vmatprep.subr.mxu0 0.0
          %663 = vmatpush2.msra.mxu0 0.0
          %664 = vmatprep.subr.mxu0 0.0
          %665 = vmatpush2.msra.mxu0 0.0
          %666 = vmatprep.subr.mxu0 0.0
          %667 = vmatpush2.msra.mxu0 0.0
          %668 = vmatprep.subr.mxu0 0.0
          %669 = vmatpush2.msra.mxu0 0.0
          %670 = vmatprep.subr.mxu0 0.0
          %671 = vmatpush2.msra.mxu0 0.0
          %672 = vmatprep.subr.mxu0 0.0
          %673 = vmatpush2.msra.mxu0 0.0
          %674 = vmatprep.subr.mxu0 0.0
          %675 = vmatpush2.msra.mxu0 0.0
          %676 = vmatprep.subr.mxu0 0.0
          %677 = vmatpush2.msra.mxu0 0.0
          %678 = vmatprep.subr.mxu0 0.0
          %679 = vmatpush2.msra.mxu0 0.0
          %680 = vmatprep.subr.mxu0 0.0
          %681 = vmatpush2.msra.mxu0 0.0
          %682 = vmatprep.mubr.f32.mxu0 0.0
          %683 = vmatmul.mubr.f32.gmra.mxu0 %v600
          %v684 = vpop.f32.mrf.mxu0
          %v685 = vadd.f32 %v617, %v684
          %v686 = vpop.f32.mrf.mxu0
          %687 = vdwg.mxu0
          %688 = vst [vmem:[%s277] sm:$0x1] %v685
        $region52: #{tpu_custom_call.1} parent=43 // pred_fallthru
          _
        %s689 = sand.u32 %s178, 1
        %s690 = scalar_lea.sflag [#allocation4], %s689
        %s691 = sand.u32 %s178, 1
        %s692 = scalar_lea.vmem [#allocation3], %s691
        // Predicated region
        $region53: #{tpu_custom_call.1} parent=43 // pred_check
          %p693 = pneg %p188
        $region54: #{tpu_custom_call.1} parent=43 // pred_check_branch
          %695 = sbr.rel (%p693) target = $region56
        $region55: #{tpu_custom_call.1} parent=43 // pred_region
          %s697 = ssub.s32 16, 16
          %698 = vsyncadd %s690, %s697
          %s699 = smul.addr %s24, 16
          %s700 = scalar_lea.hbm %s6, %s699
          %s702 = sshll.u32 %s692, 4
          %s703 = int_to_ptr.vmem [resolvable:$true] %s702
          %705 = dma.vmem_to_hbm [thread:$0]  %s703, 16, %s700, %s690
        $region56: #{tpu_custom_call.1} parent=43 // pred_fallthru
          _
      $region44: #{tpu_custom_call.1} parent=5 // pred_fallthru
        _
      %p706 = scmp.le.s32.totalorder 2, %s15
      // Predicated region
      $region57: #{tpu_custom_call.1} parent=5 // pred_check
        %p707 = pneg %p706
      $region58: #{tpu_custom_call.1} parent=5 // pred_check_branch
        %709 = sbr.rel (%p707) target = $region60
      $region59: #{tpu_custom_call.1} parent=5 // pred_region
        %s710 = ssub.s32 %s15, 2
        // Predicated region
        $region61: #{tpu_custom_call.1} parent=59 // pred_check
          %p711 = pneg %p194
        $region62: #{tpu_custom_call.1} parent=59 // pred_check_branch
          %713 = sbr.rel (%p711) target = $region64
        $region63: #{tpu_custom_call.1} parent=59 // pred_region
          %s714 = sand.u32 %s179, 1
          %s715 = scalar_lea.sflag [#allocation4], %s714
          %s716 = sand.u32 %s179, 1
          %s717 = scalar_lea.vmem [#allocation3], %s716
          %718 = dma.done %s715, 16
        $region64: #{tpu_custom_call.1} parent=59 // pred_fallthru
          _
      $region60: #{tpu_custom_call.1} parent=5 // pred_fallthru
        _
    $region6: #{tpu_custom_call.1} parent=1 // loop_footer
      %s19 = sadd.s32 1, %s15
    $region7: #{tpu_custom_call.1} parent=1 // loop_footer_branch
      %14 = sbr.rel target = $region3
    $region8: #{tpu_custom_call.1} parent=1 // loop_exit
      _
    %719 = vsyncpa [#allocation4], 1
    %s720 = scalar_lea.sflag [#allocation4], 1
    %721 = vsyncpa %s720, 1

</llo_original>
